<compile_context>
chip_gen: v7x
topology: tpu7x:2x2x1
jax: 0.10.0
libtpu: 0.0.40
codegen_flags: <defaults>
</compile_context>

<pallas_src>
import functools
from math import exp

import jax
import jax.numpy as jnp
import numpy as np
from jax import lax
from jax.experimental import pallas as pl
from jax.experimental.pallas import tpu as pltpu

WINDOW_SIZE = 3
CHANNEL = 3
SIGMA = 1.5
_C1 = 0.01 ** 2
_C2 = 0.03 ** 2


def _gaussian_1d(window_size, sigma):
    # Matches gaussian() from the PyTorch module; outer(g, g) == create_window.
    g = np.array(
        [exp(-((x - window_size // 2) ** 2) / float(2 * sigma ** 2))
         for x in range(window_size)],
        dtype=np.float32)
    return (g / g.sum()).astype(np.float32)


_G1D = _gaussian_1d(WINDOW_SIZE, SIGMA)


def _round_up(a, b):
    return (a + b - 1) // b * b


def _ssim_tile_kernel(img1_ref, img2_ref, match_ref, num_ref, den_ref, *,
                      tile_h, height):
    # img1_ref / img2_ref: (C, tile_h + 2, W + 2) strip with 1-pixel halo.
    # match_ref:           (tile_h + 2, W + 2)
    # num_ref / den_ref:   (1, 1, 1, 1) per-tile partial sums (reduced outside).
    th = tile_h
    wp = img1_ref.shape[-1]
    w = wp - (WINDOW_SIZE - 1)
    g = [float(v) for v in _G1D]

    x = img1_ref[...].astype(jnp.float32)
    y = img2_ref[...].astype(jnp.float32)
    m = match_ref[...].astype(jnp.float32)

    # --- vertical pass of the separable Gaussian: fuse the five statistics so
    #     the full-size x*x / y*y / x*y products are never materialized.
    vx = vy = vxx = vyy = vxy = vm = None
    for dy in range(WINDOW_SIZE):
        xs = x[:, dy:dy + th, :]
        ys = y[:, dy:dy + th, :]
        ms = m[dy:dy + th, :]
        gx = g[dy] * xs
        gy = g[dy] * ys
        if vx is None:
            vx, vy = gx, gy
            vxx, vyy, vxy = gx * xs, gy * ys, gx * ys
            vm = ms
        else:
            vx = vx + gx
            vy = vy + gy
            vxx = vxx + gx * xs
            vyy = vyy + gy * ys
            vxy = vxy + gx * ys
            vm = vm + ms

    # --- horizontal pass over the five statistics + the match box sum.
    # TODO(synk): for very small W the (W+2)-lane tiles underfill the 128-lane
    # vregs; packing several rows per vreg (or pltpu.roll-based lane shifts)
    # would raise VPU utilization further.
    mu1 = mu2 = sxx = syy = sxy = msum = None
    for dx in range(WINDOW_SIZE):
        hx = vx[..., dx:dx + w]
        hy = vy[..., dx:dx + w]
        hxx = vxx[..., dx:dx + w]
        hyy = vyy[..., dx:dx + w]
        hxy = vxy[..., dx:dx + w]
        hm = vm[..., dx:dx + w]
        if mu1 is None:
            mu1, mu2 = g[dx] * hx, g[dx] * hy
            sxx, syy, sxy = g[dx] * hxx, g[dx] * hyy, g[dx] * hxy
            msum = hm
        else:
            mu1 = mu1 + g[dx] * hx
            mu2 = mu2 + g[dx] * hy
            sxx = sxx + g[dx] * hxx
            syy = syy + g[dx] * hyy
            sxy = sxy + g[dx] * hxy
            msum = msum + hm

    mu1_sq = mu1 * mu1
    mu2_sq = mu2 * mu2
    mu1_mu2 = mu1 * mu2
    sigma1_sq = sxx - mu1_sq
    sigma2_sq = syy - mu2_sq
    sigma12 = sxy - mu1_mu2

    # mask = (conv(match, ones/9, pad=1) + 1e-7 > 0.5).float() + 1e-7
    mask = (msum * (1.0 / (WINDOW_SIZE * WINDOW_SIZE)) + 1e-7 > 0.5)
    mask = mask.astype(jnp.float32) + 1e-7

    # Ragged-H guard: rows past the true image height contribute nothing.
    row0 = pl.program_id(1) * th
    row_ids = lax.broadcasted_iota(jnp.int32, (th, 1), 0)
    mask = mask * (row_ids + row0 < height).astype(jnp.float32)

    numer = (2.0 * mu1_mu2 + _C1) * (2.0 * sigma12 + _C2)
    denom = (mu1_sq + mu2_sq + _C1) * (sigma1_sq + sigma2_sq + _C2)
    # EUP approximate reciprocal + one Newton step (~f32 accurate, frees VALU).
    r = pl.reciprocal(denom, approx=True)
    r = r * (2.0 - denom * r)
    one_minus_ssim = (denom - numer) * r

    # mask (th, w) broadcasts over the channel axis of one_minus_ssim (C, th, w).
    num_ref[...] = jnp.reshape(jnp.sum(one_minus_ssim * mask[None, :, :]),
                               (1, 1, 1, 1))
    den_ref[...] = jnp.reshape(jnp.sum(mask), (1, 1, 1, 1))


def _make_strips(x, tile_h, num_tiles, pad_h_extra):
    # Zero-pad by 1 on H/W (conv padding) plus pad_h_extra rows so H tiles
    # evenly, then cut overlapping (tile_h + 2)-row strips with a 1-row halo.
    xp = jnp.pad(x, ((0, 0), (0, 0), (1, 1 + pad_h_extra), (1, 1)))
    starts = jnp.arange(num_tiles, dtype=jnp.int32) * tile_h
    rows = starts[:, None] + jnp.arange(tile_h + 2, dtype=jnp.int32)[None, :]
    strips = xp[:, :, rows, :]                     # (N, c, T, tile_h+2, W+2)
    return jnp.transpose(strips, (0, 2, 1, 3, 4))  # (N, T, c, tile_h+2, W+2)


def ssim_loss(img1, img2, match, *, tile_h=None):
    n, c, h, w = img1.shape
    if tile_h is None:
        tile_h = min(32, _round_up(h, 8))   # keep strip blocks well under VMEM
    num_tiles = -(-h // tile_h)
    pad_h_extra = num_tiles * tile_h - h
    wp = w + 2

    img1_s = _make_strips(img1, tile_h, num_tiles, pad_h_extra)
    img2_s = _make_strips(img2, tile_h, num_tiles, pad_h_extra)
    match_s = _make_strips(match, tile_h, num_tiles, pad_h_extra)

    kernel = functools.partial(_ssim_tile_kernel, tile_h=tile_h, height=h)

    bytes_in = int(img1_s.size * jnp.dtype(img1_s.dtype).itemsize
                   + img2_s.size * jnp.dtype(img2_s.dtype).itemsize
                   + match_s.size * jnp.dtype(match_s.dtype).itemsize)
    cost = pl.CostEstimate(flops=int(60 * n * c * h * w),
                           transcendentals=int(n * c * h * w),
                           bytes_accessed=bytes_in)

    num_p, den_p = pl.pallas_call(
        kernel,
        grid=(n, num_tiles),
        in_specs=[
            pl.BlockSpec((None, None, c, tile_h + 2, wp),
                         lambda i, t: (i, t, 0, 0, 0)),
            pl.BlockSpec((None, None, c, tile_h + 2, wp),
                         lambda i, t: (i, t, 0, 0, 0)),
            pl.BlockSpec((None, None, None, tile_h + 2, wp),
                         lambda i, t: (i, t, 0, 0, 0)),
        ],
        out_specs=(
            pl.BlockSpec((1, 1, 1, 1), lambda i, t: (i, t, 0, 0)),
            pl.BlockSpec((1, 1, 1, 1), lambda i, t: (i, t, 0, 0)),
        ),
        out_shape=(
            jax.ShapeDtypeStruct((n, num_tiles, 1, 1), jnp.float32),
            jax.ShapeDtypeStruct((n, num_tiles, 1, 1), jnp.float32),
        ),
        compiler_params=pltpu.CompilerParams(
            dimension_semantics=("parallel", "parallel"),
            vmem_limit_bytes=32 * 1024 * 1024,
        ),
        cost_estimate=cost,
    )(img1_s, img2_s, match_s)

    # torch.sum((1 - ssim_map) * mask) / torch.sum(mask) / 3
    return jnp.sum(num_p) / jnp.sum(den_p) / 3.0


if __name__ == "__main__":
    key = jax.random.PRNGKey(0)
    k1, k2, k3 = jax.random.split(key, 3)

    N, C, H, W = 2, CHANNEL, 16, 16
    img1 = jax.random.uniform(k1, (N, C, H, W), dtype=jnp.float32)
    img2 = jax.random.uniform(k2, (N, C, H, W), dtype=jnp.float32)
    # binary-ish match mask in [0, 1]
    match = (jax.random.uniform(k3, (N, 1, H, W)) > 0.3).astype(jnp.float32)

    # tile_h=8 -> a (2, 2) grid, exercising the tiled/partial-sum path.
    loss_fn = jax.jit(functools.partial(ssim_loss, tile_h=8))
    out = loss_fn(img1, img2, match)
    jax.block_until_ready(out)
    print("KERNEL_OK")
</pallas_src>

<mosaic_0001>
module attributes {stable_mosaic.version = 11 : i64} {
  func.func @_ssim_tile_kernel(%arg0: i32, %arg1: i32, %arg2: memref<1x1x3x10x18xf32, #tpu.memory_space<vmem>>, %arg3: memref<1x1x3x10x18xf32, #tpu.memory_space<vmem>>, %arg4: memref<1x1x1x10x18xf32, #tpu.memory_space<vmem>>, %arg5: memref<1x1x1x1xf32, #tpu.memory_space<vmem>>, %arg6: memref<1x1x1x1xf32, #tpu.memory_space<vmem>>) attributes {dimension_semantics = [#tpu.dimension_semantics<parallel>, #tpu.dimension_semantics<parallel>], iteration_bounds = array<i64: 2, 2>, scalar_prefetch = 0 : i64, scratch_operands = 0 : i64, tpu.core_type = #tpu.core_type<tc>, window_params = [{transform_indices = @transform_0, window_bounds = array<i64: 1, 1, 3, 10, 18>}, {transform_indices = @transform_1, window_bounds = array<i64: 1, 1, 3, 10, 18>}, {transform_indices = @transform_2, window_bounds = array<i64: 1, 1, 1, 10, 18>}, {transform_indices = @transform_3, window_bounds = array<i64: 1, 1, 1, 1>}, {transform_indices = @transform_4, window_bounds = array<i64: 1, 1, 1, 1>}]} {
    %c0 = arith.constant 0 : index
    %c0_0 = arith.constant 0 : index
    %c0_1 = arith.constant 0 : index
    %c0_2 = arith.constant 0 : index
    %c0_3 = arith.constant 0 : index
    %0 = vector.load %arg2[%c0, %c0_0, %c0_1, %c0_2, %c0_3] : memref<1x1x3x10x18xf32, #tpu.memory_space<vmem>>, vector<1x1x3x10x18xf32>
    %1 = vector.shape_cast %0 : vector<1x1x3x10x18xf32> to vector<3x10x18xf32>
    %c0_4 = arith.constant 0 : index
    %c0_5 = arith.constant 0 : index
    %c0_6 = arith.constant 0 : index
    %c0_7 = arith.constant 0 : index
    %c0_8 = arith.constant 0 : index
    %2 = vector.load %arg3[%c0_4, %c0_5, %c0_6, %c0_7, %c0_8] : memref<1x1x3x10x18xf32, #tpu.memory_space<vmem>>, vector<1x1x3x10x18xf32>
    %3 = vector.shape_cast %2 : vector<1x1x3x10x18xf32> to vector<3x10x18xf32>
    %c0_9 = arith.constant 0 : index
    %c0_10 = arith.constant 0 : index
    %c0_11 = arith.constant 0 : index
    %c0_12 = arith.constant 0 : index
    %c0_13 = arith.constant 0 : index
    %4 = vector.load %arg4[%c0_9, %c0_10, %c0_11, %c0_12, %c0_13] : memref<1x1x1x10x18xf32, #tpu.memory_space<vmem>>, vector<1x1x1x10x18xf32>
    %5 = vector.shape_cast %4 : vector<1x1x1x10x18xf32> to vector<10x18xf32>
    %6 = vector.extract_strided_slice %1 {offsets = [0, 0, 0], sizes = [3, 8, 18], strides = [1, 1, 1]} : vector<3x10x18xf32> to vector<3x8x18xf32>
    %7 = vector.extract_strided_slice %3 {offsets = [0, 0, 0], sizes = [3, 8, 18], strides = [1, 1, 1]} : vector<3x10x18xf32> to vector<3x8x18xf32>
    %8 = vector.extract_strided_slice %5 {offsets = [0, 0], sizes = [8, 18], strides = [1, 1]} : vector<10x18xf32> to vector<8x18xf32>
    %cst = arith.constant 0.307801336 : f32
    %9 = vector.broadcast %cst : f32 to vector<3x8x18xf32>
    %10 = arith.mulf %9, %6 : vector<3x8x18xf32>
    %cst_14 = arith.constant 0.307801336 : f32
    %11 = vector.broadcast %cst_14 : f32 to vector<3x8x18xf32>
    %12 = arith.mulf %11, %7 : vector<3x8x18xf32>
    %13 = arith.mulf %10, %6 : vector<3x8x18xf32>
    %14 = arith.mulf %12, %7 : vector<3x8x18xf32>
    %15 = arith.mulf %10, %7 : vector<3x8x18xf32>
    %16 = vector.extract_strided_slice %1 {offsets = [0, 1, 0], sizes = [3, 8, 18], strides = [1, 1, 1]} : vector<3x10x18xf32> to vector<3x8x18xf32>
    %17 = vector.extract_strided_slice %3 {offsets = [0, 1, 0], sizes = [3, 8, 18], strides = [1, 1, 1]} : vector<3x10x18xf32> to vector<3x8x18xf32>
    %18 = vector.extract_strided_slice %5 {offsets = [1, 0], sizes = [8, 18], strides = [1, 1]} : vector<10x18xf32> to vector<8x18xf32>
    %cst_15 = arith.constant 0.384397358 : f32
    %19 = vector.broadcast %cst_15 : f32 to vector<3x8x18xf32>
    %20 = arith.mulf %19, %16 : vector<3x8x18xf32>
    %cst_16 = arith.constant 0.384397358 : f32
    %21 = vector.broadcast %cst_16 : f32 to vector<3x8x18xf32>
    %22 = arith.mulf %21, %17 : vector<3x8x18xf32>
    %23 = arith.addf %10, %20 : vector<3x8x18xf32>
    %24 = arith.addf %12, %22 : vector<3x8x18xf32>
    %25 = arith.mulf %20, %16 : vector<3x8x18xf32>
    %26 = arith.addf %13, %25 : vector<3x8x18xf32>
    %27 = arith.mulf %22, %17 : vector<3x8x18xf32>
    %28 = arith.addf %14, %27 : vector<3x8x18xf32>
    %29 = arith.mulf %20, %17 : vector<3x8x18xf32>
    %30 = arith.addf %15, %29 : vector<3x8x18xf32>
    %31 = arith.addf %8, %18 : vector<8x18xf32>
    %32 = vector.extract_strided_slice %1 {offsets = [0, 2, 0], sizes = [3, 8, 18], strides = [1, 1, 1]} : vector<3x10x18xf32> to vector<3x8x18xf32>
    %33 = vector.extract_strided_slice %3 {offsets = [0, 2, 0], sizes = [3, 8, 18], strides = [1, 1, 1]} : vector<3x10x18xf32> to vector<3x8x18xf32>
    %34 = vector.extract_strided_slice %5 {offsets = [2, 0], sizes = [8, 18], strides = [1, 1]} : vector<10x18xf32> to vector<8x18xf32>
    %cst_17 = arith.constant 0.307801336 : f32
    %35 = vector.broadcast %cst_17 : f32 to vector<3x8x18xf32>
    %36 = arith.mulf %35, %32 : vector<3x8x18xf32>
    %cst_18 = arith.constant 0.307801336 : f32
    %37 = vector.broadcast %cst_18 : f32 to vector<3x8x18xf32>
    %38 = arith.mulf %37, %33 : vector<3x8x18xf32>
    %39 = arith.addf %23, %36 : vector<3x8x18xf32>
    %40 = arith.addf %24, %38 : vector<3x8x18xf32>
    %41 = arith.mulf %36, %32 : vector<3x8x18xf32>
    %42 = arith.addf %26, %41 : vector<3x8x18xf32>
    %43 = arith.mulf %38, %33 : vector<3x8x18xf32>
    %44 = arith.addf %28, %43 : vector<3x8x18xf32>
    %45 = arith.mulf %36, %33 : vector<3x8x18xf32>
    %46 = arith.addf %30, %45 : vector<3x8x18xf32>
    %47 = arith.addf %31, %34 : vector<8x18xf32>
    %48 = vector.extract_strided_slice %39 {offsets = [0, 0, 0], sizes = [3, 8, 16], strides = [1, 1, 1]} : vector<3x8x18xf32> to vector<3x8x16xf32>
    %49 = vector.extract_strided_slice %40 {offsets = [0, 0, 0], sizes = [3, 8, 16], strides = [1, 1, 1]} : vector<3x8x18xf32> to vector<3x8x16xf32>
    %50 = vector.extract_strided_slice %42 {offsets = [0, 0, 0], sizes = [3, 8, 16], strides = [1, 1, 1]} : vector<3x8x18xf32> to vector<3x8x16xf32>
    %51 = vector.extract_strided_slice %44 {offsets = [0, 0, 0], sizes = [3, 8, 16], strides = [1, 1, 1]} : vector<3x8x18xf32> to vector<3x8x16xf32>
    %52 = vector.extract_strided_slice %46 {offsets = [0, 0, 0], sizes = [3, 8, 16], strides = [1, 1, 1]} : vector<3x8x18xf32> to vector<3x8x16xf32>
    %53 = vector.extract_strided_slice %47 {offsets = [0, 0], sizes = [8, 16], strides = [1, 1]} : vector<8x18xf32> to vector<8x16xf32>
    %cst_19 = arith.constant 0.307801336 : f32
    %54 = vector.broadcast %cst_19 : f32 to vector<3x8x16xf32>
    %55 = arith.mulf %54, %48 : vector<3x8x16xf32>
    %cst_20 = arith.constant 0.307801336 : f32
    %56 = vector.broadcast %cst_20 : f32 to vector<3x8x16xf32>
    %57 = arith.mulf %56, %49 : vector<3x8x16xf32>
    %cst_21 = arith.constant 0.307801336 : f32
    %58 = vector.broadcast %cst_21 : f32 to vector<3x8x16xf32>
    %59 = arith.mulf %58, %50 : vector<3x8x16xf32>
    %cst_22 = arith.constant 0.307801336 : f32
    %60 = vector.broadcast %cst_22 : f32 to vector<3x8x16xf32>
    %61 = arith.mulf %60, %51 : vector<3x8x16xf32>
    %cst_23 = arith.constant 0.307801336 : f32
    %62 = vector.broadcast %cst_23 : f32 to vector<3x8x16xf32>
    %63 = arith.mulf %62, %52 : vector<3x8x16xf32>
    %64 = vector.extract_strided_slice %39 {offsets = [0, 0, 1], sizes = [3, 8, 16], strides = [1, 1, 1]} : vector<3x8x18xf32> to vector<3x8x16xf32>
    %65 = vector.extract_strided_slice %40 {offsets = [0, 0, 1], sizes = [3, 8, 16], strides = [1, 1, 1]} : vector<3x8x18xf32> to vector<3x8x16xf32>
    %66 = vector.extract_strided_slice %42 {offsets = [0, 0, 1], sizes = [3, 8, 16], strides = [1, 1, 1]} : vector<3x8x18xf32> to vector<3x8x16xf32>
    %67 = vector.extract_strided_slice %44 {offsets = [0, 0, 1], sizes = [3, 8, 16], strides = [1, 1, 1]} : vector<3x8x18xf32> to vector<3x8x16xf32>
    %68 = vector.extract_strided_slice %46 {offsets = [0, 0, 1], sizes = [3, 8, 16], strides = [1, 1, 1]} : vector<3x8x18xf32> to vector<3x8x16xf32>
    %69 = vector.extract_strided_slice %47 {offsets = [0, 1], sizes = [8, 16], strides = [1, 1]} : vector<8x18xf32> to vector<8x16xf32>
    %cst_24 = arith.constant 0.384397358 : f32
    %70 = vector.broadcast %cst_24 : f32 to vector<3x8x16xf32>
    %71 = arith.mulf %70, %64 : vector<3x8x16xf32>
    %72 = arith.addf %55, %71 : vector<3x8x16xf32>
    %cst_25 = arith.constant 0.384397358 : f32
    %73 = vector.broadcast %cst_25 : f32 to vector<3x8x16xf32>
    %74 = arith.mulf %73, %65 : vector<3x8x16xf32>
    %75 = arith.addf %57, %74 : vector<3x8x16xf32>
    %cst_26 = arith.constant 0.384397358 : f32
    %76 = vector.broadcast %cst_26 : f32 to vector<3x8x16xf32>
    %77 = arith.mulf %76, %66 : vector<3x8x16xf32>
    %78 = arith.addf %59, %77 : vector<3x8x16xf32>
    %cst_27 = arith.constant 0.384397358 : f32
    %79 = vector.broadcast %cst_27 : f32 to vector<3x8x16xf32>
    %80 = arith.mulf %79, %67 : vector<3x8x16xf32>
    %81 = arith.addf %61, %80 : vector<3x8x16xf32>
    %cst_28 = arith.constant 0.384397358 : f32
    %82 = vector.broadcast %cst_28 : f32 to vector<3x8x16xf32>
    %83 = arith.mulf %82, %68 : vector<3x8x16xf32>
    %84 = arith.addf %63, %83 : vector<3x8x16xf32>
    %85 = arith.addf %53, %69 : vector<8x16xf32>
    %86 = vector.extract_strided_slice %39 {offsets = [0, 0, 2], sizes = [3, 8, 16], strides = [1, 1, 1]} : vector<3x8x18xf32> to vector<3x8x16xf32>
    %87 = vector.extract_strided_slice %40 {offsets = [0, 0, 2], sizes = [3, 8, 16], strides = [1, 1, 1]} : vector<3x8x18xf32> to vector<3x8x16xf32>
    %88 = vector.extract_strided_slice %42 {offsets = [0, 0, 2], sizes = [3, 8, 16], strides = [1, 1, 1]} : vector<3x8x18xf32> to vector<3x8x16xf32>
    %89 = vector.extract_strided_slice %44 {offsets = [0, 0, 2], sizes = [3, 8, 16], strides = [1, 1, 1]} : vector<3x8x18xf32> to vector<3x8x16xf32>
    %90 = vector.extract_strided_slice %46 {offsets = [0, 0, 2], sizes = [3, 8, 16], strides = [1, 1, 1]} : vector<3x8x18xf32> to vector<3x8x16xf32>
    %91 = vector.extract_strided_slice %47 {offsets = [0, 2], sizes = [8, 16], strides = [1, 1]} : vector<8x18xf32> to vector<8x16xf32>
    %cst_29 = arith.constant 0.307801336 : f32
    %92 = vector.broadcast %cst_29 : f32 to vector<3x8x16xf32>
    %93 = arith.mulf %92, %86 : vector<3x8x16xf32>
    %94 = arith.addf %72, %93 : vector<3x8x16xf32>
    %cst_30 = arith.constant 0.307801336 : f32
    %95 = vector.broadcast %cst_30 : f32 to vector<3x8x16xf32>
    %96 = arith.mulf %95, %87 : vector<3x8x16xf32>
    %97 = arith.addf %75, %96 : vector<3x8x16xf32>
    %cst_31 = arith.constant 0.307801336 : f32
    %98 = vector.broadcast %cst_31 : f32 to vector<3x8x16xf32>
    %99 = arith.mulf %98, %88 : vector<3x8x16xf32>
    %100 = arith.addf %78, %99 : vector<3x8x16xf32>
    %cst_32 = arith.constant 0.307801336 : f32
    %101 = vector.broadcast %cst_32 : f32 to vector<3x8x16xf32>
    %102 = arith.mulf %101, %89 : vector<3x8x16xf32>
    %103 = arith.addf %81, %102 : vector<3x8x16xf32>
    %cst_33 = arith.constant 0.307801336 : f32
    %104 = vector.broadcast %cst_33 : f32 to vector<3x8x16xf32>
    %105 = arith.mulf %104, %90 : vector<3x8x16xf32>
    %106 = arith.addf %84, %105 : vector<3x8x16xf32>
    %107 = arith.addf %85, %91 : vector<8x16xf32>
    %108 = arith.mulf %94, %94 : vector<3x8x16xf32>
    %109 = arith.mulf %97, %97 : vector<3x8x16xf32>
    %110 = arith.mulf %94, %97 : vector<3x8x16xf32>
    %111 = arith.subf %100, %108 : vector<3x8x16xf32>
    %112 = arith.subf %103, %109 : vector<3x8x16xf32>
    %113 = arith.subf %106, %110 : vector<3x8x16xf32>
    %cst_34 = arith.constant 0.111111112 : f32
    %114 = vector.broadcast %cst_34 : f32 to vector<8x16xf32>
    %115 = arith.mulf %107, %114 : vector<8x16xf32>
    %cst_35 = arith.constant 1.000000e-07 : f32
    %116 = vector.broadcast %cst_35 : f32 to vector<8x16xf32>
    %117 = arith.addf %115, %116 : vector<8x16xf32>
    %cst_36 = arith.constant 5.000000e-01 : f32
    %118 = vector.broadcast %cst_36 : f32 to vector<8x16xf32>
    %119 = arith.cmpf ogt, %117, %118 : vector<8x16xf32>
    %120 = arith.extui %119 : vector<8x16xi1> to vector<8x16xi32>
    %121 = arith.sitofp %120 : vector<8x16xi32> to vector<8x16xf32>
    %cst_37 = arith.constant 1.000000e-07 : f32
    %122 = vector.broadcast %cst_37 : f32 to vector<8x16xf32>
    %123 = arith.addf %121, %122 : vector<8x16xf32>
    %c8_i32 = arith.constant 8 : i32
    %124 = arith.muli %arg1, %c8_i32 : i32
    %125 = tpu.iota {dimensions = array<i32: 0>} : vector<8x1xi32>
    %126 = vector.broadcast %124 : i32 to vector<8x1xi32>
    %127 = arith.addi %125, %126 : vector<8x1xi32>
    %c16_i32 = arith.constant 16 : i32
    %128 = vector.broadcast %c16_i32 : i32 to vector<8x1xi32>
    %129 = arith.cmpi slt, %127, %128 : vector<8x1xi32>
    %130 = arith.extui %129 : vector<8x1xi1> to vector<8x1xi32>
    %131 = arith.sitofp %130 : vector<8x1xi32> to vector<8x1xf32>
    %132 = vector.broadcast %131 : vector<8x1xf32> to vector<8x16xf32>
    %133 = arith.mulf %123, %132 : vector<8x16xf32>
    %cst_38 = arith.constant 2.000000e+00 : f32
    %134 = vector.broadcast %cst_38 : f32 to vector<3x8x16xf32>
    %135 = arith.mulf %134, %110 : vector<3x8x16xf32>
    %cst_39 = arith.constant 9.99999974E-5 : f32
    %136 = vector.broadcast %cst_39 : f32 to vector<3x8x16xf32>
    %137 = arith.addf %135, %136 : vector<3x8x16xf32>
    %cst_40 = arith.constant 2.000000e+00 : f32
    %138 = vector.broadcast %cst_40 : f32 to vector<3x8x16xf32>
    %139 = arith.mulf %138, %113 : vector<3x8x16xf32>
    %cst_41 = arith.constant 8.99999984E-4 : f32
    %140 = vector.broadcast %cst_41 : f32 to vector<3x8x16xf32>
    %141 = arith.addf %139, %140 : vector<3x8x16xf32>
    %142 = arith.mulf %137, %141 : vector<3x8x16xf32>
    %143 = arith.addf %108, %109 : vector<3x8x16xf32>
    %cst_42 = arith.constant 9.99999974E-5 : f32
    %144 = vector.broadcast %cst_42 : f32 to vector<3x8x16xf32>
    %145 = arith.addf %143, %144 : vector<3x8x16xf32>
    %146 = arith.addf %111, %112 : vector<3x8x16xf32>
    %cst_43 = arith.constant 8.99999984E-4 : f32
    %147 = vector.broadcast %cst_43 : f32 to vector<3x8x16xf32>
    %148 = arith.addf %146, %147 : vector<3x8x16xf32>
    %149 = arith.mulf %145, %148 : vector<3x8x16xf32>
    %150 = tpu.reciprocal %149 {approx = true} : vector<3x8x16xf32> -> vector<3x8x16xf32>
    %151 = arith.mulf %149, %150 : vector<3x8x16xf32>
    %cst_44 = arith.constant 2.000000e+00 : f32
    %152 = vector.broadcast %cst_44 : f32 to vector<3x8x16xf32>
    %153 = arith.subf %152, %151 : vector<3x8x16xf32>
    %154 = arith.mulf %150, %153 : vector<3x8x16xf32>
    %155 = arith.subf %149, %142 : vector<3x8x16xf32>
    %156 = arith.mulf %155, %154 : vector<3x8x16xf32>
    %157 = vector.shape_cast %133 : vector<8x16xf32> to vector<1x8x16xf32>
    %158 = vector.broadcast %157 : vector<1x8x16xf32> to vector<3x8x16xf32>
    %159 = arith.mulf %156, %158 : vector<3x8x16xf32>
    %160 = vector.shape_cast %159 : vector<3x8x16xf32> to vector<1x3x8x16xf32>
    %cst_45 = arith.constant dense<0.000000e+00> : vector<1xf32>
    %161 = vector.multi_reduction <add>, %160, %cst_45 [1, 2, 3] : vector<1x3x8x16xf32> to vector<1xf32>
    %162 = vector.shape_cast %161 : vector<1xf32> to vector<1x1x1x1xf32>
    %163 = vector.extract %162[0, 0, 0, 0] : f32 from vector<1x1x1x1xf32>
    %164 = vector.broadcast %163 : f32 to vector<1x1x1x1xf32>
    %c0_46 = arith.constant 0 : index
    %c0_47 = arith.constant 0 : index
    %c0_48 = arith.constant 0 : index
    %c0_49 = arith.constant 0 : index
    %165 = vector.load %arg5[%c0_46, %c0_47, %c0_48, %c0_49] : memref<1x1x1x1xf32, #tpu.memory_space<vmem>>, vector<1x1x1x1xf32>
    tpu.vector_store %arg5[%c0_46, %c0_47, %c0_48, %c0_49], %164 {strides = array<i32>} : memref<1x1x1x1xf32, #tpu.memory_space<vmem>>, vector<1x1x1x1xf32>,
    %166 = vector.shape_cast %133 : vector<8x16xf32> to vector<1x8x16xf32>
    %cst_50 = arith.constant dense<0.000000e+00> : vector<1xf32>
    %167 = vector.multi_reduction <add>, %166, %cst_50 [1, 2] : vector<1x8x16xf32> to vector<1xf32>
    %168 = vector.shape_cast %167 : vector<1xf32> to vector<1x1x1xf32>
    %169 = vector.extract %168[0, 0, 0] : f32 from vector<1x1x1xf32>
    %170 = vector.broadcast %169 : f32 to vector<1x1x1x1xf32>
    %c0_51 = arith.constant 0 : index
    %c0_52 = arith.constant 0 : index
    %c0_53 = arith.constant 0 : index
    %c0_54 = arith.constant 0 : index
    %171 = vector.load %arg6[%c0_51, %c0_52, %c0_53, %c0_54] : memref<1x1x1x1xf32, #tpu.memory_space<vmem>>, vector<1x1x1x1xf32>
    tpu.vector_store %arg6[%c0_51, %c0_52, %c0_53, %c0_54], %170 {strides = array<i32>} : memref<1x1x1x1xf32, #tpu.memory_space<vmem>>, vector<1x1x1x1xf32>,
    return
  }
  func.func @transform_0(%arg0: i32, %arg1: i32) -> (i32, i32, i32, i32, i32) {
    %c0_i32 = arith.constant 0 : i32
    %c0_i32_0 = arith.constant 0 : i32
    %c0_i32_1 = arith.constant 0 : i32
    %c0_i32_2 = arith.constant 0 : i32
    return %arg0, %arg1, %c0_i32, %c0_i32_0, %c0_i32_1 : i32, i32, i32, i32, i32
  }
  func.func @transform_1(%arg0: i32, %arg1: i32) -> (i32, i32, i32, i32, i32) {
    %c0_i32 = arith.constant 0 : i32
    %c0_i32_0 = arith.constant 0 : i32
    %c0_i32_1 = arith.constant 0 : i32
    %c0_i32_2 = arith.constant 0 : i32
    return %arg0, %arg1, %c0_i32, %c0_i32_0, %c0_i32_1 : i32, i32, i32, i32, i32
  }
  func.func @transform_2(%arg0: i32, %arg1: i32) -> (i32, i32, i32, i32, i32) {
    %c0_i32 = arith.constant 0 : i32
    %c0_i32_0 = arith.constant 0 : i32
    %c0_i32_1 = arith.constant 0 : i32
    %c0_i32_2 = arith.constant 0 : i32
    return %arg0, %arg1, %c0_i32, %c0_i32_0, %c0_i32_1 : i32, i32, i32, i32, i32
  }
  func.func @transform_3(%arg0: i32, %arg1: i32) -> (i32, i32, i32, i32) {
    %c0_i32 = arith.constant 0 : i32
    %c0_i32_0 = arith.constant 0 : i32
    %c0_i32_1 = arith.constant 0 : i32
    return %arg0, %arg1, %c0_i32, %c0_i32_0 : i32, i32, i32, i32
  }
  func.func @transform_4(%arg0: i32, %arg1: i32) -> (i32, i32, i32, i32) {
    %c0_i32 = arith.constant 0 : i32
    %c0_i32_0 = arith.constant 0 : i32
    %c0_i32_1 = arith.constant 0 : i32
    return %arg0, %arg1, %c0_i32, %c0_i32_0 : i32, i32, i32, i32
  }
}

</mosaic_0001>

<llo_original>
// kernel: ssim_loss.1
$region0: #{ssim_loss.1}
  #allocation0 [shape = 'u32[]', space=smem, size = 0x4, offset = 0x4, fixed_abs, tag = 'smem constant byte address 0x4 - core index']
  #allocation1 [shape = 'u32[144,128]{1,0:T(1,128)}', space=vmem, size = 0x12000, scoped, tag = 'internal scratch']
  %s0 = inlined_call_operand.vmem [shape: f32[2,2,3,10,18], index: 0, kind: input, shape index: {}]
  %s1 = inlined_call_operand.vmem [shape: f32[2,2,3,10,18], index: 1, kind: input, shape index: {}]
  %s2 = inlined_call_operand.vmem [shape: f32[2,2,1,10,18], index: 2, kind: input, shape index: {}]
  %s3 = inlined_call_operand.vmem [shape: f32[2,2,1,1], index: 3, kind: output, shape index: {0}]
  %s4 = inlined_call_operand.vmem [shape: f32[2,2,1,1], index: 4, kind: output, shape index: {1}]
  %5 = xla_tuple %s3, %s4
  %s6 = sld [smem:[#allocation0]]
  $region53: #{ssim_loss.1} parent=0
    _
  %s8 = ssub.s32 1, %s6
  %s9 = scalar_select 0, %s8, %s6
  loop: start=0, step=1, limit=6
  $region2: #{ssim_loss.1} parent=0 // loop_pre_header
    _
  $region3: #{ssim_loss.1} parent=0 // loop_header
    %s11 = sphi 0, %s15
    %p12 = scmp.ge.s32.totalorder %s11, 6
    %s18 = sphi 0, %s30
    %s19 = sphi 0, %s26
    %s20 = sphi 0, %s18
    %s21 = sphi 0, %s19
    %s22 = sphi 0, %s20
    %s23 = sphi 0, %s21
    %s35 = sphi 0, %s37
    %s38 = sphi 0, %s35
    %s39 = sphi 0, %s38
    %s55 = sphi 0, %s39
    %s63 = sphi 0, %s65
    %s66 = sphi 0, %s63
    %s67 = sphi 0, %s66
    %s83 = sphi 0, %s67
    %s91 = sphi 0, %s93
    %s94 = sphi 0, %s91
    %s95 = sphi 0, %s94
    %s111 = sphi 0, %s95
    %s119 = sphi 0, %s121
    %s122 = sphi 0, %s119
    %s123 = sphi 0, %s122
    %s139 = sphi 0, %s123
    %s147 = sphi 0, %s149
    %s150 = sphi 0, %s147
    %s151 = sphi 0, %s150
    %s167 = sphi 0, %s151
  $region4: #{ssim_loss.1} parent=0 // loop_header_branch
    %14 = sbr.rel (%p12) target = $region8
  $region5: #{ssim_loss.1} parent=0 // loop_body
    %s16 = ssub.s32 %s11, 1
    %s17 = ssub.s32 %s11, 2
    %s24 = sadd.s32 1, %s19
    %p25 = scmp.ge.s32.totalorder %s24, 2
    %s26 = scalar_select %p25, 0, %s24
    %s27 = sadd.s32 1, %s18
    %s28 = scalar_select %p25, %s27, %s18
    %p29 = scmp.ge.s32.totalorder %s28, 2
    %s30 = scalar_select %p29, 0, %s28
    %s31 = ssub.s32 %s18, %s30
    %s32 = ssub.s32 %s19, %s26
    %s33 = sor.u32 %s31, %s32
    %p34 = scmp.eq.s32.totalorder %s33, 0
    %s36 = sadd.s32 %s35, 1
    %s37 = scalar_select %p34, %s35, %s36
    %p40 = pneg %p34
    %p41 = scmp.eq.s32.totalorder %s11, 3
    %p42 = por %p40, %p41
    %p43 = scmp.ne.s32.totalorder %s35, %s38
    %p44 = scmp.eq.s32.totalorder %s11, 0
    %p45 = por %p43, %p44
    %p46 = scmp.ne.s32.totalorder %s35, %s38
    %p47 = scmp.eq.s32.totalorder %s16, 3
    %p48 = por %p46, %p47
    %p49 = scmp.ne.s32.totalorder %s38, %s39
    %p50 = scmp.eq.s32.totalorder %s16, 0
    %p51 = por %p49, %p50
    %p52 = scmp.ne.s32.totalorder %s38, %s39
    %p53 = scmp.eq.s32.totalorder %s17, 3
    %p54 = por %p52, %p53
    %p56 = scmp.ne.s32.totalorder %s39, %s55
    %p57 = scmp.eq.s32.totalorder %s17, 0
    %p58 = por %p56, %p57
    %s59 = ssub.s32 %s18, %s30
    %s60 = ssub.s32 %s19, %s26
    %s61 = sor.u32 %s59, %s60
    %p62 = scmp.eq.s32.totalorder %s61, 0
    %s64 = sadd.s32 %s63, 1
    %s65 = scalar_select %p62, %s63, %s64
    %p68 = pneg %p62
    %p69 = scmp.eq.s32.totalorder %s11, 3
    %p70 = por %p68, %p69
    %p71 = scmp.ne.s32.totalorder %s63, %s66
    %p72 = scmp.eq.s32.totalorder %s11, 0
    %p73 = por %p71, %p72
    %p74 = scmp.ne.s32.totalorder %s63, %s66
    %p75 = scmp.eq.s32.totalorder %s16, 3
    %p76 = por %p74, %p75
    %p77 = scmp.ne.s32.totalorder %s66, %s67
    %p78 = scmp.eq.s32.totalorder %s16, 0
    %p79 = por %p77, %p78
    %p80 = scmp.ne.s32.totalorder %s66, %s67
    %p81 = scmp.eq.s32.totalorder %s17, 3
    %p82 = por %p80, %p81
    %p84 = scmp.ne.s32.totalorder %s67, %s83
    %p85 = scmp.eq.s32.totalorder %s17, 0
    %p86 = por %p84, %p85
    %s87 = ssub.s32 %s18, %s30
    %s88 = ssub.s32 %s19, %s26
    %s89 = sor.u32 %s87, %s88
    %p90 = scmp.eq.s32.totalorder %s89, 0
    %s92 = sadd.s32 %s91, 1
    %s93 = scalar_select %p90, %s91, %s92
    %p96 = pneg %p90
    %p97 = scmp.eq.s32.totalorder %s11, 3
    %p98 = por %p96, %p97
    %p99 = scmp.ne.s32.totalorder %s91, %s94
    %p100 = scmp.eq.s32.totalorder %s11, 0
    %p101 = por %p99, %p100
    %p102 = scmp.ne.s32.totalorder %s91, %s94
    %p103 = scmp.eq.s32.totalorder %s16, 3
    %p104 = por %p102, %p103
    %p105 = scmp.ne.s32.totalorder %s94, %s95
    %p106 = scmp.eq.s32.totalorder %s16, 0
    %p107 = por %p105, %p106
    %p108 = scmp.ne.s32.totalorder %s94, %s95
    %p109 = scmp.eq.s32.totalorder %s17, 3
    %p110 = por %p108, %p109
    %p112 = scmp.ne.s32.totalorder %s95, %s111
    %p113 = scmp.eq.s32.totalorder %s17, 0
    %p114 = por %p112, %p113
    %s115 = ssub.s32 %s18, %s30
    %s116 = ssub.s32 %s19, %s26
    %s117 = sor.u32 %s115, %s116
    %p118 = scmp.eq.s32.totalorder %s117, 0
    %s120 = sadd.s32 %s119, 1
    %s121 = scalar_select %p118, %s119, %s120
    %p124 = pneg %p118
    %p125 = scmp.eq.s32.totalorder %s11, 3
    %p126 = por %p124, %p125
    %p127 = scmp.ne.s32.totalorder %s119, %s122
    %p128 = scmp.eq.s32.totalorder %s11, 0
    %p129 = por %p127, %p128
    %p130 = scmp.ne.s32.totalorder %s119, %s122
    %p131 = scmp.eq.s32.totalorder %s16, 3
    %p132 = por %p130, %p131
    %p133 = scmp.ne.s32.totalorder %s122, %s123
    %p134 = scmp.eq.s32.totalorder %s16, 0
    %p135 = por %p133, %p134
    %p136 = scmp.ne.s32.totalorder %s122, %s123
    %p137 = scmp.eq.s32.totalorder %s17, 3
    %p138 = por %p136, %p137
    %p140 = scmp.ne.s32.totalorder %s123, %s139
    %p141 = scmp.eq.s32.totalorder %s17, 0
    %p142 = por %p140, %p141
    %s143 = ssub.s32 %s18, %s30
    %s144 = ssub.s32 %s19, %s26
    %s145 = sor.u32 %s143, %s144
    %p146 = scmp.eq.s32.totalorder %s145, 0
    %s148 = sadd.s32 %s147, 1
    %s149 = scalar_select %p146, %s147, %s148
    %p152 = pneg %p146
    %p153 = scmp.eq.s32.totalorder %s11, 3
    %p154 = por %p152, %p153
    %p155 = scmp.ne.s32.totalorder %s147, %s150
    %p156 = scmp.eq.s32.totalorder %s11, 0
    %p157 = por %p155, %p156
    %p158 = scmp.ne.s32.totalorder %s147, %s150
    %p159 = scmp.eq.s32.totalorder %s16, 3
    %p160 = por %p158, %p159
    %p161 = scmp.ne.s32.totalorder %s150, %s151
    %p162 = scmp.eq.s32.totalorder %s16, 0
    %p163 = por %p161, %p162
    %p164 = scmp.ne.s32.totalorder %s150, %s151
    %p165 = scmp.eq.s32.totalorder %s17, 3
    %p166 = por %p164, %p165
    %p168 = scmp.ne.s32.totalorder %s151, %s167
    %p169 = scmp.eq.s32.totalorder %s17, 0
    %p170 = por %p168, %p169
    %p171 = scmp.le.s32.totalorder 1, %s11
    %p172 = scmp.lt.s32.totalorder %s11, 5
    %p173 = pnand %p171, %p172
    %p174 = pneg %p173
    // Predicated region
    $region9: #{ssim_loss.1} parent=5 // pred_check
      _
    $region10: #{ssim_loss.1} parent=5 // pred_check_branch
      %176 = sbr.rel (%p173) target = $region12
    $region11: #{ssim_loss.1} parent=5 // pred_region
      %s177 = ssub.s32 %s11, 1
    $region12: #{ssim_loss.1} parent=5 // pred_fallthru
      _
    %p178 = scmp.lt.s32.totalorder %s11, 4
    // Predicated region
    $region13: #{ssim_loss.1} parent=5 // pred_check
      %p179 = pneg %p178
    $region14: #{ssim_loss.1} parent=5 // pred_check_branch
      %181 = sbr.rel (%p179) target = $region16
    $region15: #{ssim_loss.1} parent=5 // pred_region
      // Predicated region
      $region17: #{ssim_loss.1} parent=15 // pred_check
        %p182 = pneg %p45
      $region18: #{ssim_loss.1} parent=15 // pred_check_branch
        %184 = sbr.rel (%p182) target = $region20
      $region19: #{ssim_loss.1} parent=15 // pred_region
        %p185 = scmp.lt.s32.totalorder %s18, 1
        %s186 = scalar_select %p185, %s18, 1
        %p187 = scmp.lt.s32.totalorder %s19, 1
        %s188 = scalar_select %p187, %s19, 1
        %s189 = smul.addr %s188, 6
        %s190 = smul.addr %s186, 12
        %s191 = sadd.s32 %s189, %s190
        %s192 = smul.addr %s191, 8
        %s193 = scalar_lea.vmem %s0, %s192
      $region20: #{ssim_loss.1} parent=15 // pred_fallthru
        _
      // Predicated region
      $region21: #{ssim_loss.1} parent=15 // pred_check
        %p194 = pneg %p73
      $region22: #{ssim_loss.1} parent=15 // pred_check_branch
        %196 = sbr.rel (%p194) target = $region24
      $region23: #{ssim_loss.1} parent=15 // pred_region
        %p197 = scmp.lt.s32.totalorder %s18, 1
        %s198 = scalar_select %p197, %s18, 1
        %p199 = scmp.lt.s32.totalorder %s19, 1
        %s200 = scalar_select %p199, %s19, 1
        %s201 = smul.addr %s200, 6
        %s202 = smul.addr %s198, 12
        %s203 = sadd.s32 %s201, %s202
        %s204 = smul.addr %s203, 8
        %s205 = scalar_lea.vmem %s1, %s204
      $region24: #{ssim_loss.1} parent=15 // pred_fallthru
        _
      // Predicated region
      $region25: #{ssim_loss.1} parent=15 // pred_check
        %p206 = pneg %p101
      $region26: #{ssim_loss.1} parent=15 // pred_check_branch
        %208 = sbr.rel (%p206) target = $region28
      $region27: #{ssim_loss.1} parent=15 // pred_region
        %p209 = scmp.lt.s32.totalorder %s18, 1
        %s210 = scalar_select %p209, %s18, 1
        %p211 = scmp.lt.s32.totalorder %s19, 1
        %s212 = scalar_select %p211, %s19, 1
        %s213 = smul.addr %s212, 2
        %s214 = smul.addr %s210, 4
        %s215 = sadd.s32 %s213, %s214
        %s216 = smul.addr %s215, 8
        %s217 = scalar_lea.vmem %s2, %s216
      $region28: #{ssim_loss.1} parent=15 // pred_fallthru
        _
    $region16: #{ssim_loss.1} parent=5 // pred_fallthru
      _
    %p218 = scmp.le.s32.totalorder 1, %s11
    %p219 = scmp.lt.s32.totalorder %s11, 5
    %p220 = pnand %p218, %p219
    %p221 = pneg %p220
    // Predicated region
    $region29: #{ssim_loss.1} parent=5 // pred_check
      _
    $region30: #{ssim_loss.1} parent=5 // pred_check_branch
      %223 = sbr.rel (%p220) target = $region32
    $region31: #{ssim_loss.1} parent=5 // pred_region
      %s224 = ssub.s32 %s11, 1
      %p225 = scmp.lt.s32.totalorder %s20, 1
      %s226 = scalar_select %p225, %s20, 1
      %p227 = scmp.lt.s32.totalorder %s21, 1
      %s228 = scalar_select %p227, %s21, 1
      %s229 = smul.addr %s228, 6
      %s230 = smul.addr %s226, 12
      %s231 = sadd.s32 %s229, %s230
      %s232 = smul.addr %s231, 8
      %s233 = scalar_lea.vmem %s0, %s232
      %p234 = pneg %p51
      %p235 = pneg %p48
      %p236 = scmp.lt.s32.totalorder %s20, 1
      %s237 = scalar_select %p236, %s20, 1
      %p238 = scmp.lt.s32.totalorder %s21, 1
      %s239 = scalar_select %p238, %s21, 1
      %s240 = smul.addr %s239, 6
      %s241 = smul.addr %s237, 12
      %s242 = sadd.s32 %s240, %s241
      %s243 = smul.addr %s242, 8
      %s244 = scalar_lea.vmem %s1, %s243
      %p245 = pneg %p79
      %p246 = pneg %p76
      %p247 = scmp.lt.s32.totalorder %s20, 1
      %s248 = scalar_select %p247, %s20, 1
      %p249 = scmp.lt.s32.totalorder %s21, 1
      %s250 = scalar_select %p249, %s21, 1
      %s251 = smul.addr %s250, 2
      %s252 = smul.addr %s248, 4
      %s253 = sadd.s32 %s251, %s252
      %s254 = smul.addr %s253, 8
      %s255 = scalar_lea.vmem %s2, %s254
      %p256 = pneg %p107
      %p257 = pneg %p104
      %p258 = pneg %p135
      %p259 = pneg %p132
      %p260 = scmp.lt.s32.totalorder %s20, 1
      %s261 = scalar_select %p260, %s20, 1
      %p262 = scmp.lt.s32.totalorder %s21, 1
      %s263 = scalar_select %p262, %s21, 1
      %s264 = smul.addr %s261, 2
      %s265 = sadd.s32 %s263, %s264
      %s266 = scalar_lea.vmem %s3, %s265
      %p267 = pneg %p163
      %p268 = pneg %p160
      %p269 = scmp.lt.s32.totalorder %s20, 1
      %s270 = scalar_select %p269, %s20, 1
      %p271 = scmp.lt.s32.totalorder %s21, 1
      %s272 = scalar_select %p271, %s21, 1
      %s273 = smul.addr %s270, 2
      %s274 = sadd.s32 %s272, %s273
      %s275 = scalar_lea.vmem %s4, %s274
      %p276 = scmp.lt.s32.totalorder %s20, 1
      %s277 = scalar_select %p276, %s20, 1
      %p278 = scmp.lt.s32.totalorder %s21, 1
      %s279 = scalar_select %p278, %s21, 1
      %s280 = smul.addr %s279, 6
      %s281 = smul.addr %s277, 12
      %s282 = sadd.s32 %s280, %s281
      %s283 = smul.addr %s282, 8
      %s284 = scalar_lea.vmem %s0, %s283
      %p285 = scmp.lt.s32.totalorder %s20, 1
      %s286 = scalar_select %p285, %s20, 1
      %p287 = scmp.lt.s32.totalorder %s21, 1
      %s288 = scalar_select %p287, %s21, 1
      %s289 = smul.addr %s288, 6
      %s290 = smul.addr %s286, 12
      %s291 = sadd.s32 %s289, %s290
      %s292 = smul.addr %s291, 8
      %s293 = scalar_lea.vmem %s1, %s292
      %p294 = scmp.lt.s32.totalorder %s20, 1
      %s295 = scalar_select %p294, %s20, 1
      %p296 = scmp.lt.s32.totalorder %s21, 1
      %s297 = scalar_select %p296, %s21, 1
      %s298 = smul.addr %s297, 2
      %s299 = smul.addr %s295, 4
      %s300 = sadd.s32 %s298, %s299
      %s301 = smul.addr %s300, 8
      %s302 = scalar_lea.vmem %s2, %s301
      %p303 = scmp.lt.s32.totalorder %s20, 1
      %s304 = scalar_select %p303, %s20, 1
      %p305 = scmp.lt.s32.totalorder %s21, 1
      %s306 = scalar_select %p305, %s21, 1
      %s307 = smul.addr %s304, 2
      %s308 = sadd.s32 %s306, %s307
      %s309 = scalar_lea.vmem %s3, %s308
      %p310 = scmp.lt.s32.totalorder %s20, 1
      %s311 = scalar_select %p310, %s20, 1
      %p312 = scmp.lt.s32.totalorder %s21, 1
      %s313 = scalar_select %p312, %s21, 1
      %s314 = smul.addr %s311, 2
      %s315 = sadd.s32 %s313, %s314
      %s316 = scalar_lea.vmem %s4, %s315
      %v317 = vld [vmem:[%s284] sm:$0xff]
      %v318 = vld [vmem:[%s284 + $0x8] sm:$0x3]
      %v319 = vld [vmem:[%s284 + $0x10] sm:$0xff]
      %v320 = vld [vmem:[%s284 + $0x18] sm:$0x3]
      %v321 = vld [vmem:[%s284 + $0x20] sm:$0xff]
      %v322 = vld [vmem:[%s284 + $0x28] sm:$0x3]
      %v323 = vld [vmem:[%s293] sm:$0xff]
      %v324 = vld [vmem:[%s293 + $0x8] sm:$0x3]
      %v325 = vld [vmem:[%s293 + $0x10] sm:$0xff]
      %v326 = vld [vmem:[%s293 + $0x18] sm:$0x3]
      %v327 = vld [vmem:[%s293 + $0x20] sm:$0xff]
      %v328 = vld [vmem:[%s293 + $0x28] sm:$0x3]
      %v329 = vld [vmem:[%s302] sm:$0xff]
      %v330 = vld [vmem:[%s302 + $0x8] sm:$0x3]
      %v331 = vmul.f32 %v317, 0.30780134
      %v332 = vmul.f32 %v319, 0.30780134
      %v333 = vmul.f32 %v321, 0.30780134
      %v334 = vmul.f32 %v323, 0.30780134
      %v335 = vmul.f32 %v325, 0.30780134
      %v336 = vmul.f32 %v327, 0.30780134
      %v337 = vmul.f32 %v331, %v317
      %v338 = vmul.f32 %v332, %v319
      %v339 = vmul.f32 %v333, %v321
      %v340 = vmul.f32 %v334, %v323
      %v341 = vmul.f32 %v335, %v325
      %v342 = vmul.f32 %v336, %v327
      %v343 = vmul.f32 %v331, %v323
      %v344 = vmul.f32 %v332, %v325
      %v345 = vmul.f32 %v333, %v327
      %v346 = vmul.f32 %v317, 0.38439736
      %v347 = vmul.f32 %v318, 0.38439736
      %v348 = vmul.f32 %v319, 0.38439736
      %v349 = vmul.f32 %v320, 0.38439736
      %v350 = vmul.f32 %v321, 0.38439736
      %v351 = vmul.f32 %v322, 0.38439736
      %v352 = vmul.f32 %v323, 0.38439736
      %v353 = vmul.f32 %v324, 0.38439736
      %v354 = vmul.f32 %v325, 0.38439736
      %v355 = vmul.f32 %v326, 0.38439736
      %v356 = vmul.f32 %v327, 0.38439736
      %v357 = vmul.f32 %v328, 0.38439736
      %vm364 = vcmask 1046528
      %v365 = vrot.slane %v346, 1
      %v366 = vrot.slane %v347, 1
      %v367 = vsel %vm364, %v365, %v366
      %v368 = vrot.slane %v348, 1
      %v369 = vrot.slane %v349, 1
      %v370 = vsel %vm364, %v368, %v369
      %v371 = vrot.slane %v350, 1
      %v372 = vrot.slane %v351, 1
      %v373 = vsel %vm364, %v371, %v372
      %v377 = vadd.f32 %v331, %v367
      %v378 = vadd.f32 %v332, %v370
      %v379 = vadd.f32 %v333, %v373
      %v386 = vrot.slane %v352, 1
      %v387 = vrot.slane %v353, 1
      %v388 = vsel %vm364, %v386, %v387
      %v389 = vrot.slane %v354, 1
      %v390 = vrot.slane %v355, 1
      %v391 = vsel %vm364, %v389, %v390
      %v392 = vrot.slane %v356, 1
      %v393 = vrot.slane %v357, 1
      %v394 = vsel %vm364, %v392, %v393
      %v398 = vadd.f32 %v334, %v388
      %v399 = vadd.f32 %v335, %v391
      %v400 = vadd.f32 %v336, %v394
      %v401 = vmul.f32 %v346, %v317
      %v402 = vmul.f32 %v347, %v318
      %v403 = vmul.f32 %v348, %v319
      %v404 = vmul.f32 %v349, %v320
      %v405 = vmul.f32 %v350, %v321
      %v406 = vmul.f32 %v351, %v322
      %v413 = vrot.slane %v401, 1
      %v414 = vrot.slane %v402, 1
      %v415 = vsel %vm364, %v413, %v414
      %v416 = vrot.slane %v403, 1
      %v417 = vrot.slane %v404, 1
      %v418 = vsel %vm364, %v416, %v417
      %v419 = vrot.slane %v405, 1
      %v420 = vrot.slane %v406, 1
      %v421 = vsel %vm364, %v419, %v420
      %v425 = vadd.f32 %v337, %v415
      %v426 = vadd.f32 %v338, %v418
      %v427 = vadd.f32 %v339, %v421
      %v428 = vmul.f32 %v352, %v323
      %v429 = vmul.f32 %v353, %v324
      %v430 = vmul.f32 %v354, %v325
      %v431 = vmul.f32 %v355, %v326
      %v432 = vmul.f32 %v356, %v327
      %v433 = vmul.f32 %v357, %v328
      %v440 = vrot.slane %v428, 1
      %v441 = vrot.slane %v429, 1
      %v442 = vsel %vm364, %v440, %v441
      %v443 = vrot.slane %v430, 1
      %v444 = vrot.slane %v431, 1
      %v445 = vsel %vm364, %v443, %v444
      %v446 = vrot.slane %v432, 1
      %v447 = vrot.slane %v433, 1
      %v448 = vsel %vm364, %v446, %v447
      %v452 = vadd.f32 %v340, %v442
      %v453 = vadd.f32 %v341, %v445
      %v454 = vadd.f32 %v342, %v448
      %v455 = vmul.f32 %v346, %v323
      %v456 = vmul.f32 %v347, %v324
      %v457 = vmul.f32 %v348, %v325
      %v458 = vmul.f32 %v349, %v326
      %v459 = vmul.f32 %v350, %v327
      %v460 = vmul.f32 %v351, %v328
      %v467 = vrot.slane %v455, 1
      %v468 = vrot.slane %v456, 1
      %v469 = vsel %vm364, %v467, %v468
      %v470 = vrot.slane %v457, 1
      %v471 = vrot.slane %v458, 1
      %v472 = vsel %vm364, %v470, %v471
      %v473 = vrot.slane %v459, 1
      %v474 = vrot.slane %v460, 1
      %v475 = vsel %vm364, %v473, %v474
      %v479 = vadd.f32 %v343, %v469
      %v480 = vadd.f32 %v344, %v472
      %v481 = vadd.f32 %v345, %v475
      %v484 = vrot.slane %v329, 1
      %v485 = vrot.slane %v330, 1
      %v486 = vsel %vm364, %v484, %v485
      %v488 = vadd.f32 %v329, %v486
      %v489 = vmul.f32 %v318, 0.30780134
      %v490 = vmul.f32 %v320, 0.30780134
      %v491 = vmul.f32 %v322, 0.30780134
      %v492 = vmul.f32 %v324, 0.30780134
      %v493 = vmul.f32 %v326, 0.30780134
      %v494 = vmul.f32 %v328, 0.30780134
      %vm501 = vcmask 1045504
      %v502 = vrot.slane %v331, 2
      %v503 = vrot.slane %v489, 2
      %v504 = vsel %vm501, %v502, %v503
      %v505 = vrot.slane %v332, 2
      %v506 = vrot.slane %v490, 2
      %v507 = vsel %vm501, %v505, %v506
      %v508 = vrot.slane %v333, 2
      %v509 = vrot.slane %v491, 2
      %v510 = vsel %vm501, %v508, %v509
      %v514 = vadd.f32 %v377, %v504
      %v515 = vadd.f32 %v378, %v507
      %v516 = vadd.f32 %v379, %v510
      %v523 = vrot.slane %v334, 2
      %v524 = vrot.slane %v492, 2
      %v525 = vsel %vm501, %v523, %v524
      %v526 = vrot.slane %v335, 2
      %v527 = vrot.slane %v493, 2
      %v528 = vsel %vm501, %v526, %v527
      %v529 = vrot.slane %v336, 2
      %v530 = vrot.slane %v494, 2
      %v531 = vsel %vm501, %v529, %v530
      %v535 = vadd.f32 %v398, %v525
      %v536 = vadd.f32 %v399, %v528
      %v537 = vadd.f32 %v400, %v531
      %v538 = vmul.f32 %v489, %v318
      %v539 = vmul.f32 %v490, %v320
      %v540 = vmul.f32 %v491, %v322
      %v547 = vrot.slane %v337, 2
      %v548 = vrot.slane %v538, 2
      %v549 = vsel %vm501, %v547, %v548
      %v550 = vrot.slane %v338, 2
      %v551 = vrot.slane %v539, 2
      %v552 = vsel %vm501, %v550, %v551
      %v553 = vrot.slane %v339, 2
      %v554 = vrot.slane %v540, 2
      %v555 = vsel %vm501, %v553, %v554
      %v559 = vadd.f32 %v425, %v549
      %v560 = vadd.f32 %v426, %v552
      %v561 = vadd.f32 %v427, %v555
      %v562 = vmul.f32 %v492, %v324
      %v563 = vmul.f32 %v493, %v326
      %v564 = vmul.f32 %v494, %v328
      %v571 = vrot.slane %v340, 2
      %v572 = vrot.slane %v562, 2
      %v573 = vsel %vm501, %v571, %v572
      %v574 = vrot.slane %v341, 2
      %v575 = vrot.slane %v563, 2
      %v576 = vsel %vm501, %v574, %v575
      %v577 = vrot.slane %v342, 2
      %v578 = vrot.slane %v564, 2
      %v579 = vsel %vm501, %v577, %v578
      %v583 = vadd.f32 %v452, %v573
      %v584 = vadd.f32 %v453, %v576
      %v585 = vadd.f32 %v454, %v579
      %v586 = vmul.f32 %v489, %v324
      %v587 = vmul.f32 %v490, %v326
      %v588 = vmul.f32 %v491, %v328
      %v595 = vrot.slane %v343, 2
      %v596 = vrot.slane %v586, 2
      %v597 = vsel %vm501, %v595, %v596
      %v598 = vrot.slane %v344, 2
      %v599 = vrot.slane %v587, 2
      %v600 = vsel %vm501, %v598, %v599
      %v601 = vrot.slane %v345, 2
      %v602 = vrot.slane %v588, 2
      %v603 = vsel %vm501, %v601, %v602
      %v607 = vadd.f32 %v479, %v597
      %v608 = vadd.f32 %v480, %v600
      %v609 = vadd.f32 %v481, %v603
      %v610 = vrot.slane %v329, 2
      %v611 = vrot.slane %v330, 2
      %v612 = vsel %vm501, %v610, %v611
      %v614 = vadd.f32 %v488, %v612
      %v615 = vmul.f32 %v514, 0.30780134
      %v616 = vmul.f32 %v515, 0.30780134
      %v617 = vmul.f32 %v516, 0.30780134
      %v618 = vmul.f32 %v535, 0.30780134
      %v619 = vmul.f32 %v536, 0.30780134
      %v620 = vmul.f32 %v537, 0.30780134
      %v621 = vmul.f32 %v559, 0.30780134
      %v622 = vmul.f32 %v560, 0.30780134
      %v623 = vmul.f32 %v561, 0.30780134
      %v624 = vmul.f32 %v583, 0.30780134
      %v625 = vmul.f32 %v584, 0.30780134
      %v626 = vmul.f32 %v585, 0.30780134
      %v627 = vmul.f32 %v607, 0.30780134
      %v628 = vmul.f32 %v608, 0.30780134
      %v629 = vmul.f32 %v609, 0.30780134
      %v630 = vmul.f32 %v514, 0.38439736
      %v631 = vmul.f32 %v515, 0.38439736
      %v632 = vmul.f32 %v516, 0.38439736
      %636 = vrot.lane.b32.xlu0 %v630, 127
      %v637 = vpop.permute.xlu0 %636
      %638 = vrot.lane.b32.xlu0 %v631, 127
      %v639 = vpop.permute.xlu0 %638
      %640 = vrot.lane.b32.xlu0 %v632, 127
      %v641 = vpop.permute.xlu0 %640
      %v645 = vadd.f32 %v615, %v637
      %v646 = vadd.f32 %v616, %v639
      %v647 = vadd.f32 %v617, %v641
      %v648 = vmul.f32 %v535, 0.38439736
      %v649 = vmul.f32 %v536, 0.38439736
      %v650 = vmul.f32 %v537, 0.38439736
      %654 = vrot.lane.b32.xlu0 %v648, 127
      %v655 = vpop.permute.xlu0 %654
      %656 = vrot.lane.b32.xlu0 %v649, 127
      %v657 = vpop.permute.xlu0 %656
      %658 = vrot.lane.b32.xlu0 %v650, 127
      %v659 = vpop.permute.xlu0 %658
      %v663 = vadd.f32 %v618, %v655
      %v664 = vadd.f32 %v619, %v657
      %v665 = vadd.f32 %v620, %v659
      %v666 = vmul.f32 %v559, 0.38439736
      %v667 = vmul.f32 %v560, 0.38439736
      %v668 = vmul.f32 %v561, 0.38439736
      %672 = vrot.lane.b32.xlu0 %v666, 127
      %v673 = vpop.permute.xlu0 %672
      %674 = vrot.lane.b32.xlu0 %v667, 127
      %v675 = vpop.permute.xlu0 %674
      %676 = vrot.lane.b32.xlu0 %v668, 127
      %v677 = vpop.permute.xlu0 %676
      %v681 = vadd.f32 %v621, %v673
      %v682 = vadd.f32 %v622, %v675
      %v683 = vadd.f32 %v623, %v677
      %v684 = vmul.f32 %v583, 0.38439736
      %v685 = vmul.f32 %v584, 0.38439736
      %v686 = vmul.f32 %v585, 0.38439736
      %690 = vrot.lane.b32.xlu0 %v684, 127
      %v691 = vpop.permute.xlu0 %690
      %692 = vrot.lane.b32.xlu0 %v685, 127
      %v693 = vpop.permute.xlu0 %692
      %694 = vrot.lane.b32.xlu0 %v686, 127
      %v695 = vpop.permute.xlu0 %694
      %v699 = vadd.f32 %v624, %v691
      %v700 = vadd.f32 %v625, %v693
      %v701 = vadd.f32 %v626, %v695
      %v702 = vmul.f32 %v607, 0.38439736
      %v703 = vmul.f32 %v608, 0.38439736
      %v704 = vmul.f32 %v609, 0.38439736
      %708 = vrot.lane.b32.xlu0 %v702, 127
      %v709 = vpop.permute.xlu0 %708
      %710 = vrot.lane.b32.xlu0 %v703, 127
      %v711 = vpop.permute.xlu0 %710
      %712 = vrot.lane.b32.xlu0 %v704, 127
      %v713 = vpop.permute.xlu0 %712
      %v717 = vadd.f32 %v627, %v709
      %v718 = vadd.f32 %v628, %v711
      %v719 = vadd.f32 %v629, %v713
      %721 = vrot.lane.b32.xlu0 %v614, 127
      %v722 = vpop.permute.xlu0 %721
      %v724 = vadd.f32 %v614, %v722
      %728 = vrot.lane.b32.xlu0 %v615, 126
      %v729 = vpop.permute.xlu0 %728
      %730 = vrot.lane.b32.xlu0 %v616, 126
      %v731 = vpop.permute.xlu0 %730
      %732 = vrot.lane.b32.xlu0 %v617, 126
      %v733 = vpop.permute.xlu0 %732
      %v737 = vadd.f32 %v645, %v729
      %v738 = vadd.f32 %v646, %v731
      %v739 = vadd.f32 %v647, %v733
      %743 = vrot.lane.b32.xlu0 %v618, 126
      %v744 = vpop.permute.xlu0 %743
      %745 = vrot.lane.b32.xlu0 %v619, 126
      %v746 = vpop.permute.xlu0 %745
      %747 = vrot.lane.b32.xlu0 %v620, 126
      %v748 = vpop.permute.xlu0 %747
      %v752 = vadd.f32 %v663, %v744
      %v753 = vadd.f32 %v664, %v746
      %v754 = vadd.f32 %v665, %v748
      %758 = vrot.lane.b32.xlu0 %v621, 126
      %v759 = vpop.permute.xlu0 %758
      %760 = vrot.lane.b32.xlu0 %v622, 126
      %v761 = vpop.permute.xlu0 %760
      %762 = vrot.lane.b32.xlu0 %v623, 126
      %v763 = vpop.permute.xlu0 %762
      %v767 = vadd.f32 %v681, %v759
      %v768 = vadd.f32 %v682, %v761
      %v769 = vadd.f32 %v683, %v763
      %773 = vrot.lane.b32.xlu0 %v624, 126
      %v774 = vpop.permute.xlu0 %773
      %775 = vrot.lane.b32.xlu0 %v625, 126
      %v776 = vpop.permute.xlu0 %775
      %777 = vrot.lane.b32.xlu0 %v626, 126
      %v778 = vpop.permute.xlu0 %777
      %v782 = vadd.f32 %v699, %v774
      %v783 = vadd.f32 %v700, %v776
      %v784 = vadd.f32 %v701, %v778
      %788 = vrot.lane.b32.xlu0 %v627, 126
      %v789 = vpop.permute.xlu0 %788
      %790 = vrot.lane.b32.xlu0 %v628, 126
      %v791 = vpop.permute.xlu0 %790
      %792 = vrot.lane.b32.xlu0 %v629, 126
      %v793 = vpop.permute.xlu0 %792
      %v797 = vadd.f32 %v717, %v789
      %v798 = vadd.f32 %v718, %v791
      %v799 = vadd.f32 %v719, %v793
      %800 = vrot.lane.b32.xlu0 %v614, 126
      %v801 = vpop.permute.xlu0 %800
      %v803 = vadd.f32 %v724, %v801
      %v804 = vmul.f32 %v737, %v737
      %v805 = vmul.f32 %v738, %v738
      %v806 = vmul.f32 %v739, %v739
      %v807 = vmul.f32 %v752, %v752
      %v808 = vmul.f32 %v753, %v753
      %v809 = vmul.f32 %v754, %v754
      %v810 = vmul.f32 %v737, %v752
      %v811 = vmul.f32 %v738, %v753
      %v812 = vmul.f32 %v739, %v754
      %v813 = vsub.f32 %v767, %v804
      %v814 = vsub.f32 %v768, %v805
      %v815 = vsub.f32 %v769, %v806
      %v816 = vsub.f32 %v782, %v807
      %v817 = vsub.f32 %v783, %v808
      %v818 = vsub.f32 %v784, %v809
      %v819 = vsub.f32 %v797, %v810
      %v820 = vsub.f32 %v798, %v811
      %v821 = vsub.f32 %v799, %v812
      %v822 = vmul.f32 %v803, 0.11111111
      %v823 = vadd.f32 %v822, 1e-07
      %vm824 = vcmp.gt.f32.partialorder %v823, 0.5
      %v825 = vsel %vm824, 1, 0
      %v826 = vcvt.s32.f32 %v825
      %v827 = vadd.f32 %v826, 1e-07
      %s828 = smul.u32 %s21, 8
      %v829 = vlaneseq
      %v830 = vshrl.u32 %v829, 7
      %v831 = vstv %s828
      %v832 = vadd.s32 %v830, %v831
      %vm833 = vcmp.lt.s32.totalorder %v832, 16
      %v834 = vsel %vm833, 1, 0
      %v835 = vcvt.s32.f32 %v834
      %v836 = vmul.f32 %v827, %v835
      %v837 = vmul.f32 %v810, 2.0
      %v838 = vmul.f32 %v811, 2.0
      %v839 = vmul.f32 %v812, 2.0
      %v840 = vadd.f32 %v837, 0.0001
      %v841 = vadd.f32 %v838, 0.0001
      %v842 = vadd.f32 %v839, 0.0001
      %v843 = vmul.f32 %v819, 2.0
      %v844 = vmul.f32 %v820, 2.0
      %v845 = vmul.f32 %v821, 2.0
      %v846 = vadd.f32 %v843, 0.0009
      %v847 = vadd.f32 %v844, 0.0009
      %v848 = vadd.f32 %v845, 0.0009
      %v849 = vmul.f32 %v840, %v846
      %v850 = vmul.f32 %v841, %v847
      %v851 = vmul.f32 %v842, %v848
      %v852 = vadd.f32 %v804, %v807
      %v853 = vadd.f32 %v805, %v808
      %v854 = vadd.f32 %v806, %v809
      %v855 = vadd.f32 %v852, 0.0001
      %v856 = vadd.f32 %v853, 0.0001
      %v857 = vadd.f32 %v854, 0.0001
      %v858 = vadd.f32 %v813, %v816
      %v859 = vadd.f32 %v814, %v817
      %v860 = vadd.f32 %v815, %v818
      %v861 = vadd.f32 %v858, 0.0009
      %v862 = vadd.f32 %v859, 0.0009
      %v863 = vadd.f32 %v860, 0.0009
      %v864 = vmul.f32 %v855, %v861
      %v865 = vmul.f32 %v856, %v862
      %v866 = vmul.f32 %v857, %v863
      %v867 = vrcp.pop %v864
      %v868 = vrcp.pop %v865
      %v869 = vrcp.pop %v866
      %v870 = vmul.f32 %v864, %v867
      %v871 = vmul.f32 %v865, %v868
      %v872 = vmul.f32 %v866, %v869
      %v873 = vsub.f32 2.0, %v870
      %v874 = vsub.f32 2.0, %v871
      %v875 = vsub.f32 2.0, %v872
      %v876 = vmul.f32 %v867, %v873
      %v877 = vmul.f32 %v868, %v874
      %v878 = vmul.f32 %v869, %v875
      %v879 = vsub.f32 %v864, %v849
      %v880 = vsub.f32 %v865, %v850
      %v881 = vsub.f32 %v866, %v851
      %v882 = vmul.f32 %v879, %v876
      %v883 = vmul.f32 %v880, %v877
      %v884 = vmul.f32 %v881, %v878
      %v885 = vmul.f32 %v882, %v836
      %v886 = vmul.f32 %v883, %v836
      %v887 = vmul.f32 %v884, %v836
      %vm888 = vcmask 130048
      %v889 = vsel %vm888, %v885, 0.0
      %v890 = vsel %vm888, %v886, 0.0
      %v891 = vadd.f32 %v889, %v890
      %v892 = vsel %vm888, %v887, 0.0
      %v893 = vadd.f32 %v891, %v892
      %894 = vadd.xlane.f32.xlu0 %v893
      %v895 = vpop.xlane.xlu0 %894
      %v896 = vrot.slane %v895, 4
      %v897 = vadd.f32 %v895, %v896
      %v898 = vrot.slane %v897, 2
      %v899 = vadd.f32 %v897, %v898
      %v900 = vrot.slane %v899, 1
      %v901 = vadd.f32 %v899, %v900
      %s902 = vtos %v901
      %v903 = vstv %s902
      %vm904 = vcmask 0
      %905 = vst.msk [vmem:[%s309] sm:$0x1] %vm904, %v903
      %v906 = vsel %vm888, %v836, 0.0
      %907 = vadd.xlane.f32.xlu0 %v906
      %v908 = vpop.xlane.xlu0 %907
      %v909 = vrot.slane %v908, 4
      %v910 = vadd.f32 %v908, %v909
      %v911 = vrot.slane %v910, 2
      %v912 = vadd.f32 %v910, %v911
      %v913 = vrot.slane %v912, 1
      %v914 = vadd.f32 %v912, %v913
      %s915 = vtos %v914
      %v916 = vstv %s915
      %917 = vst.msk [vmem:[%s316] sm:$0x1] %vm904, %v916
      %p918 = scmp.lt.s32.totalorder %s20, 1
      %s919 = scalar_select %p918, %s20, 1
      %p920 = scmp.lt.s32.totalorder %s21, 1
      %s921 = scalar_select %p920, %s21, 1
      %s922 = smul.addr %s919, 2
      %s923 = sadd.s32 %s921, %s922
      %s924 = scalar_lea.vmem %s3, %s923
      %p925 = scmp.lt.s32.totalorder %s20, 1
      %s926 = scalar_select %p925, %s20, 1
      %p927 = scmp.lt.s32.totalorder %s21, 1
      %s928 = scalar_select %p927, %s21, 1
      %s929 = smul.addr %s926, 2
      %s930 = sadd.s32 %s928, %s929
      %s931 = scalar_lea.vmem %s4, %s930
      // Predicated region
      $region33: #{ssim_loss.1} parent=31 // pred_check
        %p932 = pneg %p132
      $region34: #{ssim_loss.1} parent=31 // pred_check_branch
        %934 = sbr.rel (%p932) target = $region36
      $region35: #{ssim_loss.1} parent=31 // pred_region
        _
      $region36: #{ssim_loss.1} parent=31 // pred_fallthru
        _
      // Predicated region
      $region37: #{ssim_loss.1} parent=31 // pred_check
        %p935 = pneg %p160
      $region38: #{ssim_loss.1} parent=31 // pred_check_branch
        %937 = sbr.rel (%p935) target = $region40
      $region39: #{ssim_loss.1} parent=31 // pred_region
        _
      $region40: #{ssim_loss.1} parent=31 // pred_fallthru
        _
    $region32: #{ssim_loss.1} parent=5 // pred_fallthru
      _
    %p938 = scmp.le.s32.totalorder 2, %s11
    // Predicated region
    $region41: #{ssim_loss.1} parent=5 // pred_check
      %p939 = pneg %p938
    $region42: #{ssim_loss.1} parent=5 // pred_check_branch
      %941 = sbr.rel (%p939) target = $region44
    $region43: #{ssim_loss.1} parent=5 // pred_region
      %s942 = ssub.s32 %s11, 2
      // Predicated region
      $region45: #{ssim_loss.1} parent=43 // pred_check
        %p943 = pneg %p138
      $region46: #{ssim_loss.1} parent=43 // pred_check_branch
        %945 = sbr.rel (%p943) target = $region48
      $region47: #{ssim_loss.1} parent=43 // pred_region
        %p946 = scmp.lt.s32.totalorder %s22, 1
        %s947 = scalar_select %p946, %s22, 1
        %p948 = scmp.lt.s32.totalorder %s23, 1
        %s949 = scalar_select %p948, %s23, 1
        %s950 = smul.addr %s947, 2
        %s951 = sadd.s32 %s949, %s950
        %s952 = scalar_lea.vmem %s3, %s951
      $region48: #{ssim_loss.1} parent=43 // pred_fallthru
        _
      // Predicated region
      $region49: #{ssim_loss.1} parent=43 // pred_check
        %p953 = pneg %p166
      $region50: #{ssim_loss.1} parent=43 // pred_check_branch
        %955 = sbr.rel (%p953) target = $region52
      $region51: #{ssim_loss.1} parent=43 // pred_region
        %p956 = scmp.lt.s32.totalorder %s22, 1
        %s957 = scalar_select %p956, %s22, 1
        %p958 = scmp.lt.s32.totalorder %s23, 1
        %s959 = scalar_select %p958, %s23, 1
        %s960 = smul.addr %s957, 2
        %s961 = sadd.s32 %s959, %s960
        %s962 = scalar_lea.vmem %s4, %s961
      $region52: #{ssim_loss.1} parent=43 // pred_fallthru
        _
    $region44: #{ssim_loss.1} parent=5 // pred_fallthru
      _
  $region6: #{ssim_loss.1} parent=0 // loop_footer
    %s15 = sadd.s32 1, %s11
  $region7: #{ssim_loss.1} parent=0 // loop_footer_branch
    %10 = sbr.rel target = $region3
  $region8: #{ssim_loss.1} parent=0 // loop_exit
    _

</llo_original>
